<compile_context>
chip_gen: v6e
topology: v6e:2x2x1
jax: 0.10.0
libtpu: 0.0.40
codegen_flags: <defaults>
</compile_context>

<pallas_src>
import math

import jax
import jax.numpy as jnp
import numpy as np
from jax.experimental import pallas as pl
from jax.experimental.pallas import tpu as pltpu


def make_sinusoidal_table(max_seq_len: int, emb_size: int) -> jnp.ndarray:
    """Same pos_emb buffer as the PyTorch __init__ (plain-JAX glue)."""
    position = jnp.arange(max_seq_len, dtype=jnp.float32)[:, None]          # (L, 1)
    div_term = jnp.exp(jnp.arange(0, emb_size, 2, dtype=jnp.float32)
                       * (-math.log(10000.0) / emb_size))                    # (E/2,)
    angles = position * div_term                                             # (L, E/2)
    pe = jnp.zeros((max_seq_len, emb_size), dtype=jnp.float32)
    pe = pe.at[:, 0::2].set(jnp.sin(angles))
    pe = pe.at[:, 1::2].set(jnp.cos(angles))
    return pe


def _choose_seq_tile(seq_len: int) -> int:
    # Largest divisor of S from the list (bigger tiles amortize per-step
    # overhead and the per-step DMA-wait boundary); falls back to the full
    # sequence for awkward lengths.
    for ts in (256, 128, 64, 32, 16, 8):
        if seq_len % ts == 0:
            return ts
    return seq_len


def word_position_embedding(x, word_table, pos_table):
    """x: (B, S) int token ids -> (B, S, E) float32 embeddings."""
    B, S = x.shape
    V, E = word_table.shape
    max_seq_len = pos_table.shape[0]
    assert S <= max_seq_len, "sequence longer than positional table"

    # Lane-dense embedding width: pad E up to a multiple of 128.
    E_pad = ((E + 127) // 128) * 128
    if E_pad != E:
        word_table = jnp.pad(word_table, ((0, 0), (0, E_pad - E)))
        pos_table = jnp.pad(pos_table, ((0, 0), (0, E_pad - E)))
    word_table = word_table.astype(jnp.float32)
    pos_slice = pos_table[:S, :].astype(jnp.float32)

    TS = _choose_seq_tile(S)
    n_seq_tiles = S // TS

    # Clamp once in the wrapper (PyTorch would raise on OOB ids).
    # TODO(synk): for production-scale B*S, stage per-tile ids into SMEM via DMA
    # instead of scalar-prefetching the full vector (1-D SMEM pads to next_pow2).
    tok_flat = jnp.clip(x, 0, V - 1).reshape(B * S).astype(jnp.int32)

    def kernel(tok_ref, word_hbm, pos_ref, out_ref, gath_ref, sems):
        # tok_ref : SMEM (B*S,) int32        scalar-prefetched token ids
        # word_hbm: HBM  (V, E_pad) f32      raw ref (pl.ANY), gathered via DMA
        # pos_ref : VMEM (TS, E_pad) f32     positional slab (DMA'd once per seq tile)
        # out_ref : VMEM (1, TS, E_pad) f32
        # gath_ref: VMEM (2, TS, E_pad) f32  double-buffered gathered rows
        # sems    : DMA semaphores (2,)      one per buffer slot
        si = pl.program_id(0)          # seq-tile index (outer, "parallel")
        b = pl.program_id(1)           # batch index (inner, "arbitrary")
        nb = pl.num_programs(1)
        slot = b % 2

        def issue(batch_idx, dst_slot):
            base = batch_idx * S + si * TS
            for t in range(TS):
                tok = tok_ref[base + t]
                pltpu.make_async_copy(
                    word_hbm.at[tok],            # (E_pad,) row in HBM
                    gath_ref.at[dst_slot, t],    # (E_pad,) row in VMEM
                    sems.at[dst_slot],
                ).start()

        # Prime the first slot at the start of each inner (batch) pass.
        @pl.when(b == 0)
        def _():
            issue(b, slot)

        # Prefetch the next batch element's rows into the other slot BEFORE
        # waiting on the current slot (hides the gather latency).
        @pl.when(b + 1 < nb)
        def _():
            issue(b + 1, 1 - slot)

        # Wait for the current slot's TS row copies (all signal sems[slot]).
        for t in range(TS):
            pltpu.make_async_copy(
                word_hbm.at[0],
                gath_ref.at[slot, t],
                sems.at[slot],
            ).wait()

        # Positional add on the VPU; the pos block is shared across the batch.
        out_ref[0] = gath_ref[slot] + pos_ref[...]

    grid_spec = pltpu.PrefetchScalarGridSpec(
        num_scalar_prefetch=1,
        grid=(n_seq_tiles, B),
        in_specs=[
            # Embedding table stays in HBM; rows are DMA-gathered manually.
            pl.BlockSpec(memory_space=pl.ANY),
            # Positional slab: block index ignores the inner batch axis, so it
            # is fetched once per seq tile and reused for every batch element.
            pl.BlockSpec((TS, E_pad), lambda si, b, tok: (si, 0)),
        ],
        out_specs=pl.BlockSpec((1, TS, E_pad), lambda si, b, tok: (b, si, 0)),
        scratch_shapes=[
            pltpu.VMEM((2, TS, E_pad), jnp.float32),
            pltpu.SemaphoreType.DMA((2,)),
        ],
    )

    bytes_accessed = (B * S * E_pad * 4      # output
                      + B * S * E_pad * 4    # gathered table rows
                      + S * E_pad * 4        # positional table (read once)
                      + B * S * 4)           # token ids
    out = pl.pallas_call(
        kernel,
        out_shape=jax.ShapeDtypeStruct((B, S, E_pad), jnp.float32),
        grid_spec=grid_spec,
        compiler_params=pltpu.CompilerParams(
            dimension_semantics=("parallel", "arbitrary")),
        cost_estimate=pl.CostEstimate(
            flops=B * S * E_pad,             # just the positional add
            transcendentals=0,
            bytes_accessed=bytes_accessed),
    )(tok_flat, word_table, pos_slice)

    return out[..., :E] if E_pad != E else out


if __name__ == "__main__":
    # Small shapes consistent with the module.
    VOCAB_SIZE = 64
    MAX_SEQ_LEN = 16
    EMB_SIZE = 32
    BATCH = 2
    SEQ = 8

    key = jax.random.PRNGKey(0)
    k_table, k_tok = jax.random.split(key)

    # nn.Embedding default init: N(0, 1).
    word_table = jax.random.normal(k_table, (VOCAB_SIZE, EMB_SIZE),
                                   dtype=jnp.float32)
    pos_table = make_sinusoidal_table(MAX_SEQ_LEN, EMB_SIZE)

    x = jax.random.randint(k_tok, (BATCH, SEQ), 0, VOCAB_SIZE, dtype=jnp.int32)

    out = word_position_embedding(x, word_table, pos_table)
    out = jax.block_until_ready(out)

    # Pure-JAX reference (same semantics as the PyTorch forward).
    ref = word_table[x] + pos_table[:SEQ, :][None, :, :]
    np.testing.assert_allclose(np.asarray(out), np.asarray(ref),
                               rtol=1e-6, atol=1e-6)

    print("KERNEL_OK")
</pallas_src>

<mosaic_0001>
module attributes {stable_mosaic.version = 11 : i64} {
  func.func @kernel(%arg0: i32, %arg1: i32, %arg2: memref<16xi32, #tpu.memory_space<smem>>, %arg3: memref<64x128xf32, #tpu.memory_space<any>>, %arg4: memref<8x128xf32, #tpu.memory_space<vmem>>, %arg5: memref<1x8x128xf32, #tpu.memory_space<vmem>>, %arg6: memref<2x8x128xf32, #tpu.memory_space<vmem>>, %arg7: memref<2x!tpu.dma_semaphore, #tpu.memory_space<semaphore_mem>>) attributes {dimension_semantics = [#tpu.dimension_semantics<parallel>, #tpu.dimension_semantics<arbitrary>], iteration_bounds = array<i64: 1, 2>, scalar_prefetch = 1 : i64, scratch_operands = 2 : i64, tpu.core_type = #tpu.core_type<tc>, window_params = [{}, {transform_indices = @transform_1, window_bounds = array<i64: 8, 128>}, {transform_indices = @transform_2, window_bounds = array<i64: 1, 8, 128>}]} {
    %c2_i32 = arith.constant 2 : i32
    %c0_i32 = arith.constant 0 : i32
    %0 = arith.cmpi eq, %c2_i32, %c0_i32 : i32
    %c1_i32 = arith.constant 1 : i32
    %1 = arith.select %0, %c1_i32, %c2_i32 : i32
    %2 = arith.remsi %arg1, %1 : i32
    %c0_i32_0 = arith.constant 0 : i32
    %3 = arith.cmpi ne, %2, %c0_i32_0 : i32
    %c0_i32_1 = arith.constant 0 : i32
    %4 = arith.cmpi slt, %2, %c0_i32_1 : i32
    %c0_i32_2 = arith.constant 0 : i32
    %5 = arith.cmpi slt, %1, %c0_i32_2 : i32
    %6 = arith.xori %4, %5 : i1
    %7 = arith.andi %6, %3 : i1
    %8 = arith.addi %2, %1 : i32
    %9 = arith.select %7, %8, %2 : i32
    %c0_i32_3 = arith.constant 0 : i32
    %10 = arith.cmpi eq, %arg1, %c0_i32_3 : i32
    %11 = arith.extui %10 : i1 to i32
    %c0_i32_4 = arith.constant 0 : i32
    %12 = arith.cmpi ne, %11, %c0_i32_4 : i32
    scf.if %12 {
      %c8_i32 = arith.constant 8 : i32
      %73 = arith.muli %arg1, %c8_i32 : i32
      %c8_i32_41 = arith.constant 8 : i32
      %74 = arith.muli %arg0, %c8_i32_41 : i32
      %75 = arith.addi %73, %74 : i32
      %c0_i32_42 = arith.constant 0 : i32
      %76 = arith.addi %75, %c0_i32_42 : i32
      %77 = arith.index_cast %76 : i32 to index
      %78 = memref.load %arg2[%77] : memref<16xi32, #tpu.memory_space<smem>>
      %c0_i32_43 = arith.constant 0 : i32
      %c0_i32_44 = arith.constant 0 : i32
      %79 = tpu.memref_slice %arg3[%78, %c0_i32_44] : memref<64x128xf32, #tpu.memory_space<any>> -> memref<1x128xf32, #tpu.memory_space<any>>
      %80 = tpu.memref_squeeze %79 : memref<1x128xf32, #tpu.memory_space<any>> -> memref<128xf32, #tpu.memory_space<any>>
      %c0_i32_45 = arith.constant 0 : i32
      %81 = tpu.memref_slice %arg6[%9, %c0_i32_43, %c0_i32_45] : memref<2x8x128xf32, #tpu.memory_space<vmem>> -> memref<1x1x128xf32, #tpu.memory_space<vmem>>
      %82 = tpu.memref_squeeze %81 : memref<1x1x128xf32, #tpu.memory_space<vmem>> -> memref<128xf32, #tpu.memory_space<vmem>>
      %83 = tpu.memref_slice %arg7[%9] : memref<2x!tpu.dma_semaphore, #tpu.memory_space<semaphore_mem>> -> memref<1x!tpu.dma_semaphore, #tpu.memory_space<semaphore_mem>>
      %84 = tpu.memref_squeeze %83 : memref<1x!tpu.dma_semaphore, #tpu.memory_space<semaphore_mem>> -> memref<!tpu.dma_semaphore, #tpu.memory_space<semaphore_mem>>
      tpu.enqueue_dma source(%80 : memref<128xf32, #tpu.memory_space<any>>) target(%82 : memref<128xf32, #tpu.memory_space<vmem>>) target_semaphore(%84 : memref<!tpu.dma_semaphore, #tpu.memory_space<semaphore_mem>>)
      %c1_i32_46 = arith.constant 1 : i32
      %85 = arith.addi %75, %c1_i32_46 : i32
      %86 = arith.index_cast %85 : i32 to index
      %87 = memref.load %arg2[%86] : memref<16xi32, #tpu.memory_space<smem>>
      %c1_i32_47 = arith.constant 1 : i32
      %c0_i32_48 = arith.constant 0 : i32
      %88 = tpu.memref_slice %arg3[%87, %c0_i32_48] : memref<64x128xf32, #tpu.memory_space<any>> -> memref<1x128xf32, #tpu.memory_space<any>>
      %89 = tpu.memref_squeeze %88 : memref<1x128xf32, #tpu.memory_space<any>> -> memref<128xf32, #tpu.memory_space<any>>
      %c0_i32_49 = arith.constant 0 : i32
      %90 = tpu.memref_slice %arg6[%9, %c1_i32_47, %c0_i32_49] : memref<2x8x128xf32, #tpu.memory_space<vmem>> -> memref<1x1x128xf32, #tpu.memory_space<vmem>>
      %91 = tpu.memref_squeeze %90 : memref<1x1x128xf32, #tpu.memory_space<vmem>> -> memref<128xf32, #tpu.memory_space<vmem>>
      %92 = tpu.memref_slice %arg7[%9] : memref<2x!tpu.dma_semaphore, #tpu.memory_space<semaphore_mem>> -> memref<1x!tpu.dma_semaphore, #tpu.memory_space<semaphore_mem>>
      %93 = tpu.memref_squeeze %92 : memref<1x!tpu.dma_semaphore, #tpu.memory_space<semaphore_mem>> -> memref<!tpu.dma_semaphore, #tpu.memory_space<semaphore_mem>>
      tpu.enqueue_dma source(%89 : memref<128xf32, #tpu.memory_space<any>>) target(%91 : memref<128xf32, #tpu.memory_space<vmem>>) target_semaphore(%93 : memref<!tpu.dma_semaphore, #tpu.memory_space<semaphore_mem>>)
      %c2_i32_50 = arith.constant 2 : i32
      %94 = arith.addi %75, %c2_i32_50 : i32
      %95 = arith.index_cast %94 : i32 to index
      %96 = memref.load %arg2[%95] : memref<16xi32, #tpu.memory_space<smem>>
      %c2_i32_51 = arith.constant 2 : i32
      %c0_i32_52 = arith.constant 0 : i32
      %97 = tpu.memref_slice %arg3[%96, %c0_i32_52] : memref<64x128xf32, #tpu.memory_space<any>> -> memref<1x128xf32, #tpu.memory_space<any>>
      %98 = tpu.memref_squeeze %97 : memref<1x128xf32, #tpu.memory_space<any>> -> memref<128xf32, #tpu.memory_space<any>>
      %c0_i32_53 = arith.constant 0 : i32
      %99 = tpu.memref_slice %arg6[%9, %c2_i32_51, %c0_i32_53] : memref<2x8x128xf32, #tpu.memory_space<vmem>> -> memref<1x1x128xf32, #tpu.memory_space<vmem>>
      %100 = tpu.memref_squeeze %99 : memref<1x1x128xf32, #tpu.memory_space<vmem>> -> memref<128xf32, #tpu.memory_space<vmem>>
      %101 = tpu.memref_slice %arg7[%9] : memref<2x!tpu.dma_semaphore, #tpu.memory_space<semaphore_mem>> -> memref<1x!tpu.dma_semaphore, #tpu.memory_space<semaphore_mem>>
      %102 = tpu.memref_squeeze %101 : memref<1x!tpu.dma_semaphore, #tpu.memory_space<semaphore_mem>> -> memref<!tpu.dma_semaphore, #tpu.memory_space<semaphore_mem>>
      tpu.enqueue_dma source(%98 : memref<128xf32, #tpu.memory_space<any>>) target(%100 : memref<128xf32, #tpu.memory_space<vmem>>) target_semaphore(%102 : memref<!tpu.dma_semaphore, #tpu.memory_space<semaphore_mem>>)
      %c3_i32_54 = arith.constant 3 : i32
      %103 = arith.addi %75, %c3_i32_54 : i32
      %104 = arith.index_cast %103 : i32 to index
      %105 = memref.load %arg2[%104] : memref<16xi32, #tpu.memory_space<smem>>
      %c3_i32_55 = arith.constant 3 : i32
      %c0_i32_56 = arith.constant 0 : i32
      %106 = tpu.memref_slice %arg3[%105, %c0_i32_56] : memref<64x128xf32, #tpu.memory_space<any>> -> memref<1x128xf32, #tpu.memory_space<any>>
      %107 = tpu.memref_squeeze %106 : memref<1x128xf32, #tpu.memory_space<any>> -> memref<128xf32, #tpu.memory_space<any>>
      %c0_i32_57 = arith.constant 0 : i32
      %108 = tpu.memref_slice %arg6[%9, %c3_i32_55, %c0_i32_57] : memref<2x8x128xf32, #tpu.memory_space<vmem>> -> memref<1x1x128xf32, #tpu.memory_space<vmem>>
      %109 = tpu.memref_squeeze %108 : memref<1x1x128xf32, #tpu.memory_space<vmem>> -> memref<128xf32, #tpu.memory_space<vmem>>
      %110 = tpu.memref_slice %arg7[%9] : memref<2x!tpu.dma_semaphore, #tpu.memory_space<semaphore_mem>> -> memref<1x!tpu.dma_semaphore, #tpu.memory_space<semaphore_mem>>
      %111 = tpu.memref_squeeze %110 : memref<1x!tpu.dma_semaphore, #tpu.memory_space<semaphore_mem>> -> memref<!tpu.dma_semaphore, #tpu.memory_space<semaphore_mem>>
      tpu.enqueue_dma source(%107 : memref<128xf32, #tpu.memory_space<any>>) target(%109 : memref<128xf32, #tpu.memory_space<vmem>>) target_semaphore(%111 : memref<!tpu.dma_semaphore, #tpu.memory_space<semaphore_mem>>)
      %c4_i32_58 = arith.constant 4 : i32
      %112 = arith.addi %75, %c4_i32_58 : i32
      %113 = arith.index_cast %112 : i32 to index
      %114 = memref.load %arg2[%113] : memref<16xi32, #tpu.memory_space<smem>>
      %c4_i32_59 = arith.constant 4 : i32
      %c0_i32_60 = arith.constant 0 : i32
      %115 = tpu.memref_slice %arg3[%114, %c0_i32_60] : memref<64x128xf32, #tpu.memory_space<any>> -> memref<1x128xf32, #tpu.memory_space<any>>
      %116 = tpu.memref_squeeze %115 : memref<1x128xf32, #tpu.memory_space<any>> -> memref<128xf32, #tpu.memory_space<any>>
      %c0_i32_61 = arith.constant 0 : i32
      %117 = tpu.memref_slice %arg6[%9, %c4_i32_59, %c0_i32_61] : memref<2x8x128xf32, #tpu.memory_space<vmem>> -> memref<1x1x128xf32, #tpu.memory_space<vmem>>
      %118 = tpu.memref_squeeze %117 : memref<1x1x128xf32, #tpu.memory_space<vmem>> -> memref<128xf32, #tpu.memory_space<vmem>>
      %119 = tpu.memref_slice %arg7[%9] : memref<2x!tpu.dma_semaphore, #tpu.memory_space<semaphore_mem>> -> memref<1x!tpu.dma_semaphore, #tpu.memory_space<semaphore_mem>>
      %120 = tpu.memref_squeeze %119 : memref<1x!tpu.dma_semaphore, #tpu.memory_space<semaphore_mem>> -> memref<!tpu.dma_semaphore, #tpu.memory_space<semaphore_mem>>
      tpu.enqueue_dma source(%116 : memref<128xf32, #tpu.memory_space<any>>) target(%118 : memref<128xf32, #tpu.memory_space<vmem>>) target_semaphore(%120 : memref<!tpu.dma_semaphore, #tpu.memory_space<semaphore_mem>>)
      %c5_i32_62 = arith.constant 5 : i32
      %121 = arith.addi %75, %c5_i32_62 : i32
      %122 = arith.index_cast %121 : i32 to index
      %123 = memref.load %arg2[%122] : memref<16xi32, #tpu.memory_space<smem>>
      %c5_i32_63 = arith.constant 5 : i32
      %c0_i32_64 = arith.constant 0 : i32
      %124 = tpu.memref_slice %arg3[%123, %c0_i32_64] : memref<64x128xf32, #tpu.memory_space<any>> -> memref<1x128xf32, #tpu.memory_space<any>>
      %125 = tpu.memref_squeeze %124 : memref<1x128xf32, #tpu.memory_space<any>> -> memref<128xf32, #tpu.memory_space<any>>
      %c0_i32_65 = arith.constant 0 : i32
      %126 = tpu.memref_slice %arg6[%9, %c5_i32_63, %c0_i32_65] : memref<2x8x128xf32, #tpu.memory_space<vmem>> -> memref<1x1x128xf32, #tpu.memory_space<vmem>>
      %127 = tpu.memref_squeeze %126 : memref<1x1x128xf32, #tpu.memory_space<vmem>> -> memref<128xf32, #tpu.memory_space<vmem>>
      %128 = tpu.memref_slice %arg7[%9] : memref<2x!tpu.dma_semaphore, #tpu.memory_space<semaphore_mem>> -> memref<1x!tpu.dma_semaphore, #tpu.memory_space<semaphore_mem>>
      %129 = tpu.memref_squeeze %128 : memref<1x!tpu.dma_semaphore, #tpu.memory_space<semaphore_mem>> -> memref<!tpu.dma_semaphore, #tpu.memory_space<semaphore_mem>>
      tpu.enqueue_dma source(%125 : memref<128xf32, #tpu.memory_space<any>>) target(%127 : memref<128xf32, #tpu.memory_space<vmem>>) target_semaphore(%129 : memref<!tpu.dma_semaphore, #tpu.memory_space<semaphore_mem>>)
      %c6_i32_66 = arith.constant 6 : i32
      %130 = arith.addi %75, %c6_i32_66 : i32
      %131 = arith.index_cast %130 : i32 to index
      %132 = memref.load %arg2[%131] : memref<16xi32, #tpu.memory_space<smem>>
      %c6_i32_67 = arith.constant 6 : i32
      %c0_i32_68 = arith.constant 0 : i32
      %133 = tpu.memref_slice %arg3[%132, %c0_i32_68] : memref<64x128xf32, #tpu.memory_space<any>> -> memref<1x128xf32, #tpu.memory_space<any>>
      %134 = tpu.memref_squeeze %133 : memref<1x128xf32, #tpu.memory_space<any>> -> memref<128xf32, #tpu.memory_space<any>>
      %c0_i32_69 = arith.constant 0 : i32
      %135 = tpu.memref_slice %arg6[%9, %c6_i32_67, %c0_i32_69] : memref<2x8x128xf32, #tpu.memory_space<vmem>> -> memref<1x1x128xf32, #tpu.memory_space<vmem>>
      %136 = tpu.memref_squeeze %135 : memref<1x1x128xf32, #tpu.memory_space<vmem>> -> memref<128xf32, #tpu.memory_space<vmem>>
      %137 = tpu.memref_slice %arg7[%9] : memref<2x!tpu.dma_semaphore, #tpu.memory_space<semaphore_mem>> -> memref<1x!tpu.dma_semaphore, #tpu.memory_space<semaphore_mem>>
      %138 = tpu.memref_squeeze %137 : memref<1x!tpu.dma_semaphore, #tpu.memory_space<semaphore_mem>> -> memref<!tpu.dma_semaphore, #tpu.memory_space<semaphore_mem>>
      tpu.enqueue_dma source(%134 : memref<128xf32, #tpu.memory_space<any>>) target(%136 : memref<128xf32, #tpu.memory_space<vmem>>) target_semaphore(%138 : memref<!tpu.dma_semaphore, #tpu.memory_space<semaphore_mem>>)
      %c7_i32_70 = arith.constant 7 : i32
      %139 = arith.addi %75, %c7_i32_70 : i32
      %140 = arith.index_cast %139 : i32 to index
      %141 = memref.load %arg2[%140] : memref<16xi32, #tpu.memory_space<smem>>
      %c7_i32_71 = arith.constant 7 : i32
      %c0_i32_72 = arith.constant 0 : i32
      %142 = tpu.memref_slice %arg3[%141, %c0_i32_72] : memref<64x128xf32, #tpu.memory_space<any>> -> memref<1x128xf32, #tpu.memory_space<any>>
      %143 = tpu.memref_squeeze %142 : memref<1x128xf32, #tpu.memory_space<any>> -> memref<128xf32, #tpu.memory_space<any>>
      %c0_i32_73 = arith.constant 0 : i32
      %144 = tpu.memref_slice %arg6[%9, %c7_i32_71, %c0_i32_73] : memref<2x8x128xf32, #tpu.memory_space<vmem>> -> memref<1x1x128xf32, #tpu.memory_space<vmem>>
      %145 = tpu.memref_squeeze %144 : memref<1x1x128xf32, #tpu.memory_space<vmem>> -> memref<128xf32, #tpu.memory_space<vmem>>
      %146 = tpu.memref_slice %arg7[%9] : memref<2x!tpu.dma_semaphore, #tpu.memory_space<semaphore_mem>> -> memref<1x!tpu.dma_semaphore, #tpu.memory_space<semaphore_mem>>
      %147 = tpu.memref_squeeze %146 : memref<1x!tpu.dma_semaphore, #tpu.memory_space<semaphore_mem>> -> memref<!tpu.dma_semaphore, #tpu.memory_space<semaphore_mem>>
      tpu.enqueue_dma source(%143 : memref<128xf32, #tpu.memory_space<any>>) target(%145 : memref<128xf32, #tpu.memory_space<vmem>>) target_semaphore(%147 : memref<!tpu.dma_semaphore, #tpu.memory_space<semaphore_mem>>)
    } else {
    }
    %c1_i32_5 = arith.constant 1 : i32
    %13 = arith.addi %arg1, %c1_i32_5 : i32
    %c2_i32_6 = arith.constant 2 : i32
    %14 = arith.cmpi slt, %13, %c2_i32_6 : i32
    %15 = arith.extui %14 : i1 to i32
    %c0_i32_7 = arith.constant 0 : i32
    %16 = arith.cmpi ne, %15, %c0_i32_7 : i32
    scf.if %16 {
      %c1_i32_41 = arith.constant 1 : i32
      %73 = arith.addi %arg1, %c1_i32_41 : i32
      %c1_i32_42 = arith.constant 1 : i32
      %74 = arith.subi %c1_i32_42, %9 : i32
      %c8_i32 = arith.constant 8 : i32
      %75 = arith.muli %73, %c8_i32 : i32
      %c8_i32_43 = arith.constant 8 : i32
      %76 = arith.muli %arg0, %c8_i32_43 : i32
      %77 = arith.addi %75, %76 : i32
      %c0_i32_44 = arith.constant 0 : i32
      %78 = arith.addi %77, %c0_i32_44 : i32
      %79 = arith.index_cast %78 : i32 to index
      %80 = memref.load %arg2[%79] : memref<16xi32, #tpu.memory_space<smem>>
      %c0_i32_45 = arith.constant 0 : i32
      %c0_i32_46 = arith.constant 0 : i32
      %81 = tpu.memref_slice %arg3[%80, %c0_i32_46] : memref<64x128xf32, #tpu.memory_space<any>> -> memref<1x128xf32, #tpu.memory_space<any>>
      %82 = tpu.memref_squeeze %81 : memref<1x128xf32, #tpu.memory_space<any>> -> memref<128xf32, #tpu.memory_space<any>>
      %c0_i32_47 = arith.constant 0 : i32
      %83 = tpu.memref_slice %arg6[%74, %c0_i32_45, %c0_i32_47] : memref<2x8x128xf32, #tpu.memory_space<vmem>> -> memref<1x1x128xf32, #tpu.memory_space<vmem>>
      %84 = tpu.memref_squeeze %83 : memref<1x1x128xf32, #tpu.memory_space<vmem>> -> memref<128xf32, #tpu.memory_space<vmem>>
      %85 = tpu.memref_slice %arg7[%74] : memref<2x!tpu.dma_semaphore, #tpu.memory_space<semaphore_mem>> -> memref<1x!tpu.dma_semaphore, #tpu.memory_space<semaphore_mem>>
      %86 = tpu.memref_squeeze %85 : memref<1x!tpu.dma_semaphore, #tpu.memory_space<semaphore_mem>> -> memref<!tpu.dma_semaphore, #tpu.memory_space<semaphore_mem>>
      tpu.enqueue_dma source(%82 : memref<128xf32, #tpu.memory_space<any>>) target(%84 : memref<128xf32, #tpu.memory_space<vmem>>) target_semaphore(%86 : memref<!tpu.dma_semaphore, #tpu.memory_space<semaphore_mem>>)
      %c1_i32_48 = arith.constant 1 : i32
      %87 = arith.addi %77, %c1_i32_48 : i32
      %88 = arith.index_cast %87 : i32 to index
      %89 = memref.load %arg2[%88] : memref<16xi32, #tpu.memory_space<smem>>
      %c1_i32_49 = arith.constant 1 : i32
      %c0_i32_50 = arith.constant 0 : i32
      %90 = tpu.memref_slice %arg3[%89, %c0_i32_50] : memref<64x128xf32, #tpu.memory_space<any>> -> memref<1x128xf32, #tpu.memory_space<any>>
      %91 = tpu.memref_squeeze %90 : memref<1x128xf32, #tpu.memory_space<any>> -> memref<128xf32, #tpu.memory_space<any>>
      %c0_i32_51 = arith.constant 0 : i32
      %92 = tpu.memref_slice %arg6[%74, %c1_i32_49, %c0_i32_51] : memref<2x8x128xf32, #tpu.memory_space<vmem>> -> memref<1x1x128xf32, #tpu.memory_space<vmem>>
      %93 = tpu.memref_squeeze %92 : memref<1x1x128xf32, #tpu.memory_space<vmem>> -> memref<128xf32, #tpu.memory_space<vmem>>
      %94 = tpu.memref_slice %arg7[%74] : memref<2x!tpu.dma_semaphore, #tpu.memory_space<semaphore_mem>> -> memref<1x!tpu.dma_semaphore, #tpu.memory_space<semaphore_mem>>
      %95 = tpu.memref_squeeze %94 : memref<1x!tpu.dma_semaphore, #tpu.memory_space<semaphore_mem>> -> memref<!tpu.dma_semaphore, #tpu.memory_space<semaphore_mem>>
      tpu.enqueue_dma source(%91 : memref<128xf32, #tpu.memory_space<any>>) target(%93 : memref<128xf32, #tpu.memory_space<vmem>>) target_semaphore(%95 : memref<!tpu.dma_semaphore, #tpu.memory_space<semaphore_mem>>)
      %c2_i32_52 = arith.constant 2 : i32
      %96 = arith.addi %77, %c2_i32_52 : i32
      %97 = arith.index_cast %96 : i32 to index
      %98 = memref.load %arg2[%97] : memref<16xi32, #tpu.memory_space<smem>>
      %c2_i32_53 = arith.constant 2 : i32
      %c0_i32_54 = arith.constant 0 : i32
      %99 = tpu.memref_slice %arg3[%98, %c0_i32_54] : memref<64x128xf32, #tpu.memory_space<any>> -> memref<1x128xf32, #tpu.memory_space<any>>
      %100 = tpu.memref_squeeze %99 : memref<1x128xf32, #tpu.memory_space<any>> -> memref<128xf32, #tpu.memory_space<any>>
      %c0_i32_55 = arith.constant 0 : i32
      %101 = tpu.memref_slice %arg6[%74, %c2_i32_53, %c0_i32_55] : memref<2x8x128xf32, #tpu.memory_space<vmem>> -> memref<1x1x128xf32, #tpu.memory_space<vmem>>
      %102 = tpu.memref_squeeze %101 : memref<1x1x128xf32, #tpu.memory_space<vmem>> -> memref<128xf32, #tpu.memory_space<vmem>>
      %103 = tpu.memref_slice %arg7[%74] : memref<2x!tpu.dma_semaphore, #tpu.memory_space<semaphore_mem>> -> memref<1x!tpu.dma_semaphore, #tpu.memory_space<semaphore_mem>>
      %104 = tpu.memref_squeeze %103 : memref<1x!tpu.dma_semaphore, #tpu.memory_space<semaphore_mem>> -> memref<!tpu.dma_semaphore, #tpu.memory_space<semaphore_mem>>
      tpu.enqueue_dma source(%100 : memref<128xf32, #tpu.memory_space<any>>) target(%102 : memref<128xf32, #tpu.memory_space<vmem>>) target_semaphore(%104 : memref<!tpu.dma_semaphore, #tpu.memory_space<semaphore_mem>>)
      %c3_i32_56 = arith.constant 3 : i32
      %105 = arith.addi %77, %c3_i32_56 : i32
      %106 = arith.index_cast %105 : i32 to index
      %107 = memref.load %arg2[%106] : memref<16xi32, #tpu.memory_space<smem>>
      %c3_i32_57 = arith.constant 3 : i32
      %c0_i32_58 = arith.constant 0 : i32
      %108 = tpu.memref_slice %arg3[%107, %c0_i32_58] : memref<64x128xf32, #tpu.memory_space<any>> -> memref<1x128xf32, #tpu.memory_space<any>>
      %109 = tpu.memref_squeeze %108 : memref<1x128xf32, #tpu.memory_space<any>> -> memref<128xf32, #tpu.memory_space<any>>
      %c0_i32_59 = arith.constant 0 : i32
      %110 = tpu.memref_slice %arg6[%74, %c3_i32_57, %c0_i32_59] : memref<2x8x128xf32, #tpu.memory_space<vmem>> -> memref<1x1x128xf32, #tpu.memory_space<vmem>>
      %111 = tpu.memref_squeeze %110 : memref<1x1x128xf32, #tpu.memory_space<vmem>> -> memref<128xf32, #tpu.memory_space<vmem>>
      %112 = tpu.memref_slice %arg7[%74] : memref<2x!tpu.dma_semaphore, #tpu.memory_space<semaphore_mem>> -> memref<1x!tpu.dma_semaphore, #tpu.memory_space<semaphore_mem>>
      %113 = tpu.memref_squeeze %112 : memref<1x!tpu.dma_semaphore, #tpu.memory_space<semaphore_mem>> -> memref<!tpu.dma_semaphore, #tpu.memory_space<semaphore_mem>>
      tpu.enqueue_dma source(%109 : memref<128xf32, #tpu.memory_space<any>>) target(%111 : memref<128xf32, #tpu.memory_space<vmem>>) target_semaphore(%113 : memref<!tpu.dma_semaphore, #tpu.memory_space<semaphore_mem>>)
      %c4_i32_60 = arith.constant 4 : i32
      %114 = arith.addi %77, %c4_i32_60 : i32
      %115 = arith.index_cast %114 : i32 to index
      %116 = memref.load %arg2[%115] : memref<16xi32, #tpu.memory_space<smem>>
      %c4_i32_61 = arith.constant 4 : i32
      %c0_i32_62 = arith.constant 0 : i32
      %117 = tpu.memref_slice %arg3[%116, %c0_i32_62] : memref<64x128xf32, #tpu.memory_space<any>> -> memref<1x128xf32, #tpu.memory_space<any>>
      %118 = tpu.memref_squeeze %117 : memref<1x128xf32, #tpu.memory_space<any>> -> memref<128xf32, #tpu.memory_space<any>>
      %c0_i32_63 = arith.constant 0 : i32
      %119 = tpu.memref_slice %arg6[%74, %c4_i32_61, %c0_i32_63] : memref<2x8x128xf32, #tpu.memory_space<vmem>> -> memref<1x1x128xf32, #tpu.memory_space<vmem>>
      %120 = tpu.memref_squeeze %119 : memref<1x1x128xf32, #tpu.memory_space<vmem>> -> memref<128xf32, #tpu.memory_space<vmem>>
      %121 = tpu.memref_slice %arg7[%74] : memref<2x!tpu.dma_semaphore, #tpu.memory_space<semaphore_mem>> -> memref<1x!tpu.dma_semaphore, #tpu.memory_space<semaphore_mem>>
      %122 = tpu.memref_squeeze %121 : memref<1x!tpu.dma_semaphore, #tpu.memory_space<semaphore_mem>> -> memref<!tpu.dma_semaphore, #tpu.memory_space<semaphore_mem>>
      tpu.enqueue_dma source(%118 : memref<128xf32, #tpu.memory_space<any>>) target(%120 : memref<128xf32, #tpu.memory_space<vmem>>) target_semaphore(%122 : memref<!tpu.dma_semaphore, #tpu.memory_space<semaphore_mem>>)
      %c5_i32_64 = arith.constant 5 : i32
      %123 = arith.addi %77, %c5_i32_64 : i32
      %124 = arith.index_cast %123 : i32 to index
      %125 = memref.load %arg2[%124] : memref<16xi32, #tpu.memory_space<smem>>
      %c5_i32_65 = arith.constant 5 : i32
      %c0_i32_66 = arith.constant 0 : i32
      %126 = tpu.memref_slice %arg3[%125, %c0_i32_66] : memref<64x128xf32, #tpu.memory_space<any>> -> memref<1x128xf32, #tpu.memory_space<any>>
      %127 = tpu.memref_squeeze %126 : memref<1x128xf32, #tpu.memory_space<any>> -> memref<128xf32, #tpu.memory_space<any>>
      %c0_i32_67 = arith.constant 0 : i32
      %128 = tpu.memref_slice %arg6[%74, %c5_i32_65, %c0_i32_67] : memref<2x8x128xf32, #tpu.memory_space<vmem>> -> memref<1x1x128xf32, #tpu.memory_space<vmem>>
      %129 = tpu.memref_squeeze %128 : memref<1x1x128xf32, #tpu.memory_space<vmem>> -> memref<128xf32, #tpu.memory_space<vmem>>
      %130 = tpu.memref_slice %arg7[%74] : memref<2x!tpu.dma_semaphore, #tpu.memory_space<semaphore_mem>> -> memref<1x!tpu.dma_semaphore, #tpu.memory_space<semaphore_mem>>
      %131 = tpu.memref_squeeze %130 : memref<1x!tpu.dma_semaphore, #tpu.memory_space<semaphore_mem>> -> memref<!tpu.dma_semaphore, #tpu.memory_space<semaphore_mem>>
      tpu.enqueue_dma source(%127 : memref<128xf32, #tpu.memory_space<any>>) target(%129 : memref<128xf32, #tpu.memory_space<vmem>>) target_semaphore(%131 : memref<!tpu.dma_semaphore, #tpu.memory_space<semaphore_mem>>)
      %c6_i32_68 = arith.constant 6 : i32
      %132 = arith.addi %77, %c6_i32_68 : i32
      %133 = arith.index_cast %132 : i32 to index
      %134 = memref.load %arg2[%133] : memref<16xi32, #tpu.memory_space<smem>>
      %c6_i32_69 = arith.constant 6 : i32
      %c0_i32_70 = arith.constant 0 : i32
      %135 = tpu.memref_slice %arg3[%134, %c0_i32_70] : memref<64x128xf32, #tpu.memory_space<any>> -> memref<1x128xf32, #tpu.memory_space<any>>
      %136 = tpu.memref_squeeze %135 : memref<1x128xf32, #tpu.memory_space<any>> -> memref<128xf32, #tpu.memory_space<any>>
      %c0_i32_71 = arith.constant 0 : i32
      %137 = tpu.memref_slice %arg6[%74, %c6_i32_69, %c0_i32_71] : memref<2x8x128xf32, #tpu.memory_space<vmem>> -> memref<1x1x128xf32, #tpu.memory_space<vmem>>
      %138 = tpu.memref_squeeze %137 : memref<1x1x128xf32, #tpu.memory_space<vmem>> -> memref<128xf32, #tpu.memory_space<vmem>>
      %139 = tpu.memref_slice %arg7[%74] : memref<2x!tpu.dma_semaphore, #tpu.memory_space<semaphore_mem>> -> memref<1x!tpu.dma_semaphore, #tpu.memory_space<semaphore_mem>>
      %140 = tpu.memref_squeeze %139 : memref<1x!tpu.dma_semaphore, #tpu.memory_space<semaphore_mem>> -> memref<!tpu.dma_semaphore, #tpu.memory_space<semaphore_mem>>
      tpu.enqueue_dma source(%136 : memref<128xf32, #tpu.memory_space<any>>) target(%138 : memref<128xf32, #tpu.memory_space<vmem>>) target_semaphore(%140 : memref<!tpu.dma_semaphore, #tpu.memory_space<semaphore_mem>>)
      %c7_i32_72 = arith.constant 7 : i32
      %141 = arith.addi %77, %c7_i32_72 : i32
      %142 = arith.index_cast %141 : i32 to index
      %143 = memref.load %arg2[%142] : memref<16xi32, #tpu.memory_space<smem>>
      %c7_i32_73 = arith.constant 7 : i32
      %c0_i32_74 = arith.constant 0 : i32
      %144 = tpu.memref_slice %arg3[%143, %c0_i32_74] : memref<64x128xf32, #tpu.memory_space<any>> -> memref<1x128xf32, #tpu.memory_space<any>>
      %145 = tpu.memref_squeeze %144 : memref<1x128xf32, #tpu.memory_space<any>> -> memref<128xf32, #tpu.memory_space<any>>
      %c0_i32_75 = arith.constant 0 : i32
      %146 = tpu.memref_slice %arg6[%74, %c7_i32_73, %c0_i32_75] : memref<2x8x128xf32, #tpu.memory_space<vmem>> -> memref<1x1x128xf32, #tpu.memory_space<vmem>>
      %147 = tpu.memref_squeeze %146 : memref<1x1x128xf32, #tpu.memory_space<vmem>> -> memref<128xf32, #tpu.memory_space<vmem>>
      %148 = tpu.memref_slice %arg7[%74] : memref<2x!tpu.dma_semaphore, #tpu.memory_space<semaphore_mem>> -> memref<1x!tpu.dma_semaphore, #tpu.memory_space<semaphore_mem>>
      %149 = tpu.memref_squeeze %148 : memref<1x!tpu.dma_semaphore, #tpu.memory_space<semaphore_mem>> -> memref<!tpu.dma_semaphore, #tpu.memory_space<semaphore_mem>>
      tpu.enqueue_dma source(%145 : memref<128xf32, #tpu.memory_space<any>>) target(%147 : memref<128xf32, #tpu.memory_space<vmem>>) target_semaphore(%149 : memref<!tpu.dma_semaphore, #tpu.memory_space<semaphore_mem>>)
    } else {
    }
    %c0_i32_8 = arith.constant 0 : i32
    %c0_i32_9 = arith.constant 0 : i32
    %c0_i32_10 = arith.constant 0 : i32
    %17 = tpu.memref_slice %arg3[%c0_i32_8, %c0_i32_10] : memref<64x128xf32, #tpu.memory_space<any>> -> memref<1x128xf32, #tpu.memory_space<any>>
    %18 = tpu.memref_squeeze %17 : memref<1x128xf32, #tpu.memory_space<any>> -> memref<128xf32, #tpu.memory_space<any>>
    %c0_i32_11 = arith.constant 0 : i32
    %19 = tpu.memref_slice %arg6[%9, %c0_i32_9, %c0_i32_11] : memref<2x8x128xf32, #tpu.memory_space<vmem>> -> memref<1x1x128xf32, #tpu.memory_space<vmem>>
    %20 = tpu.memref_squeeze %19 : memref<1x1x128xf32, #tpu.memory_space<vmem>> -> memref<128xf32, #tpu.memory_space<vmem>>
    %21 = tpu.memref_slice %arg7[%9] : memref<2x!tpu.dma_semaphore, #tpu.memory_space<semaphore_mem>> -> memref<1x!tpu.dma_semaphore, #tpu.memory_space<semaphore_mem>>
    %22 = tpu.memref_squeeze %21 : memref<1x!tpu.dma_semaphore, #tpu.memory_space<semaphore_mem>> -> memref<!tpu.dma_semaphore, #tpu.memory_space<semaphore_mem>>
    tpu.wait_dma2 semaphore(%22 : memref<!tpu.dma_semaphore, #tpu.memory_space<semaphore_mem>>) src(%18 : memref<128xf32, #tpu.memory_space<any>>) dst(%20 : memref<128xf32, #tpu.memory_space<vmem>>)
    %c0_i32_12 = arith.constant 0 : i32
    %c1_i32_13 = arith.constant 1 : i32
    %c0_i32_14 = arith.constant 0 : i32
    %23 = tpu.memref_slice %arg3[%c0_i32_12, %c0_i32_14] : memref<64x128xf32, #tpu.memory_space<any>> -> memref<1x128xf32, #tpu.memory_space<any>>
    %24 = tpu.memref_squeeze %23 : memref<1x128xf32, #tpu.memory_space<any>> -> memref<128xf32, #tpu.memory_space<any>>
    %c0_i32_15 = arith.constant 0 : i32
    %25 = tpu.memref_slice %arg6[%9, %c1_i32_13, %c0_i32_15] : memref<2x8x128xf32, #tpu.memory_space<vmem>> -> memref<1x1x128xf32, #tpu.memory_space<vmem>>
    %26 = tpu.memref_squeeze %25 : memref<1x1x128xf32, #tpu.memory_space<vmem>> -> memref<128xf32, #tpu.memory_space<vmem>>
    %27 = tpu.memref_slice %arg7[%9] : memref<2x!tpu.dma_semaphore, #tpu.memory_space<semaphore_mem>> -> memref<1x!tpu.dma_semaphore, #tpu.memory_space<semaphore_mem>>
    %28 = tpu.memref_squeeze %27 : memref<1x!tpu.dma_semaphore, #tpu.memory_space<semaphore_mem>> -> memref<!tpu.dma_semaphore, #tpu.memory_space<semaphore_mem>>
    tpu.wait_dma2 semaphore(%28 : memref<!tpu.dma_semaphore, #tpu.memory_space<semaphore_mem>>) src(%24 : memref<128xf32, #tpu.memory_space<any>>) dst(%26 : memref<128xf32, #tpu.memory_space<vmem>>)
    %c0_i32_16 = arith.constant 0 : i32
    %c2_i32_17 = arith.constant 2 : i32
    %c0_i32_18 = arith.constant 0 : i32
    %29 = tpu.memref_slice %arg3[%c0_i32_16, %c0_i32_18] : memref<64x128xf32, #tpu.memory_space<any>> -> memref<1x128xf32, #tpu.memory_space<any>>
    %30 = tpu.memref_squeeze %29 : memref<1x128xf32, #tpu.memory_space<any>> -> memref<128xf32, #tpu.memory_space<any>>
    %c0_i32_19 = arith.constant 0 : i32
    %31 = tpu.memref_slice %arg6[%9, %c2_i32_17, %c0_i32_19] : memref<2x8x128xf32, #tpu.memory_space<vmem>> -> memref<1x1x128xf32, #tpu.memory_space<vmem>>
    %32 = tpu.memref_squeeze %31 : memref<1x1x128xf32, #tpu.memory_space<vmem>> -> memref<128xf32, #tpu.memory_space<vmem>>
    %33 = tpu.memref_slice %arg7[%9] : memref<2x!tpu.dma_semaphore, #tpu.memory_space<semaphore_mem>> -> memref<1x!tpu.dma_semaphore, #tpu.memory_space<semaphore_mem>>
    %34 = tpu.memref_squeeze %33 : memref<1x!tpu.dma_semaphore, #tpu.memory_space<semaphore_mem>> -> memref<!tpu.dma_semaphore, #tpu.memory_space<semaphore_mem>>
    tpu.wait_dma2 semaphore(%34 : memref<!tpu.dma_semaphore, #tpu.memory_space<semaphore_mem>>) src(%30 : memref<128xf32, #tpu.memory_space<any>>) dst(%32 : memref<128xf32, #tpu.memory_space<vmem>>)
    %c0_i32_20 = arith.constant 0 : i32
    %c3_i32 = arith.constant 3 : i32
    %c0_i32_21 = arith.constant 0 : i32
    %35 = tpu.memref_slice %arg3[%c0_i32_20, %c0_i32_21] : memref<64x128xf32, #tpu.memory_space<any>> -> memref<1x128xf32, #tpu.memory_space<any>>
    %36 = tpu.memref_squeeze %35 : memref<1x128xf32, #tpu.memory_space<any>> -> memref<128xf32, #tpu.memory_space<any>>
    %c0_i32_22 = arith.constant 0 : i32
    %37 = tpu.memref_slice %arg6[%9, %c3_i32, %c0_i32_22] : memref<2x8x128xf32, #tpu.memory_space<vmem>> -> memref<1x1x128xf32, #tpu.memory_space<vmem>>
    %38 = tpu.memref_squeeze %37 : memref<1x1x128xf32, #tpu.memory_space<vmem>> -> memref<128xf32, #tpu.memory_space<vmem>>
    %39 = tpu.memref_slice %arg7[%9] : memref<2x!tpu.dma_semaphore, #tpu.memory_space<semaphore_mem>> -> memref<1x!tpu.dma_semaphore, #tpu.memory_space<semaphore_mem>>
    %40 = tpu.memref_squeeze %39 : memref<1x!tpu.dma_semaphore, #tpu.memory_space<semaphore_mem>> -> memref<!tpu.dma_semaphore, #tpu.memory_space<semaphore_mem>>
    tpu.wait_dma2 semaphore(%40 : memref<!tpu.dma_semaphore, #tpu.memory_space<semaphore_mem>>) src(%36 : memref<128xf32, #tpu.memory_space<any>>) dst(%38 : memref<128xf32, #tpu.memory_space<vmem>>)
    %c0_i32_23 = arith.constant 0 : i32
    %c4_i32 = arith.constant 4 : i32
    %c0_i32_24 = arith.constant 0 : i32
    %41 = tpu.memref_slice %arg3[%c0_i32_23, %c0_i32_24] : memref<64x128xf32, #tpu.memory_space<any>> -> memref<1x128xf32, #tpu.memory_space<any>>
    %42 = tpu.memref_squeeze %41 : memref<1x128xf32, #tpu.memory_space<any>> -> memref<128xf32, #tpu.memory_space<any>>
    %c0_i32_25 = arith.constant 0 : i32
    %43 = tpu.memref_slice %arg6[%9, %c4_i32, %c0_i32_25] : memref<2x8x128xf32, #tpu.memory_space<vmem>> -> memref<1x1x128xf32, #tpu.memory_space<vmem>>
    %44 = tpu.memref_squeeze %43 : memref<1x1x128xf32, #tpu.memory_space<vmem>> -> memref<128xf32, #tpu.memory_space<vmem>>
    %45 = tpu.memref_slice %arg7[%9] : memref<2x!tpu.dma_semaphore, #tpu.memory_space<semaphore_mem>> -> memref<1x!tpu.dma_semaphore, #tpu.memory_space<semaphore_mem>>
    %46 = tpu.memref_squeeze %45 : memref<1x!tpu.dma_semaphore, #tpu.memory_space<semaphore_mem>> -> memref<!tpu.dma_semaphore, #tpu.memory_space<semaphore_mem>>
    tpu.wait_dma2 semaphore(%46 : memref<!tpu.dma_semaphore, #tpu.memory_space<semaphore_mem>>) src(%42 : memref<128xf32, #tpu.memory_space<any>>) dst(%44 : memref<128xf32, #tpu.memory_space<vmem>>)
    %c0_i32_26 = arith.constant 0 : i32
    %c5_i32 = arith.constant 5 : i32
    %c0_i32_27 = arith.constant 0 : i32
    %47 = tpu.memref_slice %arg3[%c0_i32_26, %c0_i32_27] : memref<64x128xf32, #tpu.memory_space<any>> -> memref<1x128xf32, #tpu.memory_space<any>>
    %48 = tpu.memref_squeeze %47 : memref<1x128xf32, #tpu.memory_space<any>> -> memref<128xf32, #tpu.memory_space<any>>
    %c0_i32_28 = arith.constant 0 : i32
    %49 = tpu.memref_slice %arg6[%9, %c5_i32, %c0_i32_28] : memref<2x8x128xf32, #tpu.memory_space<vmem>> -> memref<1x1x128xf32, #tpu.memory_space<vmem>>
    %50 = tpu.memref_squeeze %49 : memref<1x1x128xf32, #tpu.memory_space<vmem>> -> memref<128xf32, #tpu.memory_space<vmem>>
    %51 = tpu.memref_slice %arg7[%9] : memref<2x!tpu.dma_semaphore, #tpu.memory_space<semaphore_mem>> -> memref<1x!tpu.dma_semaphore, #tpu.memory_space<semaphore_mem>>
    %52 = tpu.memref_squeeze %51 : memref<1x!tpu.dma_semaphore, #tpu.memory_space<semaphore_mem>> -> memref<!tpu.dma_semaphore, #tpu.memory_space<semaphore_mem>>
    tpu.wait_dma2 semaphore(%52 : memref<!tpu.dma_semaphore, #tpu.memory_space<semaphore_mem>>) src(%48 : memref<128xf32, #tpu.memory_space<any>>) dst(%50 : memref<128xf32, #tpu.memory_space<vmem>>)
    %c0_i32_29 = arith.constant 0 : i32
    %c6_i32 = arith.constant 6 : i32
    %c0_i32_30 = arith.constant 0 : i32
    %53 = tpu.memref_slice %arg3[%c0_i32_29, %c0_i32_30] : memref<64x128xf32, #tpu.memory_space<any>> -> memref<1x128xf32, #tpu.memory_space<any>>
    %54 = tpu.memref_squeeze %53 : memref<1x128xf32, #tpu.memory_space<any>> -> memref<128xf32, #tpu.memory_space<any>>
    %c0_i32_31 = arith.constant 0 : i32
    %55 = tpu.memref_slice %arg6[%9, %c6_i32, %c0_i32_31] : memref<2x8x128xf32, #tpu.memory_space<vmem>> -> memref<1x1x128xf32, #tpu.memory_space<vmem>>
    %56 = tpu.memref_squeeze %55 : memref<1x1x128xf32, #tpu.memory_space<vmem>> -> memref<128xf32, #tpu.memory_space<vmem>>
    %57 = tpu.memref_slice %arg7[%9] : memref<2x!tpu.dma_semaphore, #tpu.memory_space<semaphore_mem>> -> memref<1x!tpu.dma_semaphore, #tpu.memory_space<semaphore_mem>>
    %58 = tpu.memref_squeeze %57 : memref<1x!tpu.dma_semaphore, #tpu.memory_space<semaphore_mem>> -> memref<!tpu.dma_semaphore, #tpu.memory_space<semaphore_mem>>
    tpu.wait_dma2 semaphore(%58 : memref<!tpu.dma_semaphore, #tpu.memory_space<semaphore_mem>>) src(%54 : memref<128xf32, #tpu.memory_space<any>>) dst(%56 : memref<128xf32, #tpu.memory_space<vmem>>)
    %c0_i32_32 = arith.constant 0 : i32
    %c7_i32 = arith.constant 7 : i32
    %c0_i32_33 = arith.constant 0 : i32
    %59 = tpu.memref_slice %arg3[%c0_i32_32, %c0_i32_33] : memref<64x128xf32, #tpu.memory_space<any>> -> memref<1x128xf32, #tpu.memory_space<any>>
    %60 = tpu.memref_squeeze %59 : memref<1x128xf32, #tpu.memory_space<any>> -> memref<128xf32, #tpu.memory_space<any>>
    %c0_i32_34 = arith.constant 0 : i32
    %61 = tpu.memref_slice %arg6[%9, %c7_i32, %c0_i32_34] : memref<2x8x128xf32, #tpu.memory_space<vmem>> -> memref<1x1x128xf32, #tpu.memory_space<vmem>>
    %62 = tpu.memref_squeeze %61 : memref<1x1x128xf32, #tpu.memory_space<vmem>> -> memref<128xf32, #tpu.memory_space<vmem>>
    %63 = tpu.memref_slice %arg7[%9] : memref<2x!tpu.dma_semaphore, #tpu.memory_space<semaphore_mem>> -> memref<1x!tpu.dma_semaphore, #tpu.memory_space<semaphore_mem>>
    %64 = tpu.memref_squeeze %63 : memref<1x!tpu.dma_semaphore, #tpu.memory_space<semaphore_mem>> -> memref<!tpu.dma_semaphore, #tpu.memory_space<semaphore_mem>>
    tpu.wait_dma2 semaphore(%64 : memref<!tpu.dma_semaphore, #tpu.memory_space<semaphore_mem>>) src(%60 : memref<128xf32, #tpu.memory_space<any>>) dst(%62 : memref<128xf32, #tpu.memory_space<vmem>>)
    %65 = arith.index_cast %9 : i32 to index
    %c0 = arith.constant 0 : index
    %c0_35 = arith.constant 0 : index
    %66 = vector.load %arg6[%65, %c0, %c0_35] : memref<2x8x128xf32, #tpu.memory_space<vmem>>, vector<1x8x128xf32>
    %67 = vector.shape_cast %66 : vector<1x8x128xf32> to vector<8x128xf32>
    %c0_36 = arith.constant 0 : index
    %c0_37 = arith.constant 0 : index
    %68 = vector.load %arg4[%c0_36, %c0_37] : memref<8x128xf32, #tpu.memory_space<vmem>>, vector<8x128xf32>
    %69 = arith.addf %67, %68 : vector<8x128xf32>
    %c0_38 = arith.constant 0 : index
    %c0_39 = arith.constant 0 : index
    %c0_40 = arith.constant 0 : index
    %70 = vector.load %arg5[%c0_38, %c0_39, %c0_40] : memref<1x8x128xf32, #tpu.memory_space<vmem>>, vector<1x8x128xf32>
    %71 = vector.shape_cast %70 : vector<1x8x128xf32> to vector<8x128xf32>
    %72 = vector.shape_cast %69 : vector<8x128xf32> to vector<1x8x128xf32>
    tpu.vector_store %arg5[%c0_38, %c0_39, %c0_40], %72 {strides = array<i32>} : memref<1x8x128xf32, #tpu.memory_space<vmem>>, vector<1x8x128xf32>,
    return
  }
  func.func @transform_1(%arg0: i32, %arg1: i32, %arg2: memref<16xi32, #tpu.memory_space<smem>>) -> (i32, i32) {
    %c0_i32 = arith.constant 0 : i32
    %c0_i32_0 = arith.constant 0 : i32
    return %arg0, %c0_i32 : i32, i32
  }
  func.func @transform_2(%arg0: i32, %arg1: i32, %arg2: memref<16xi32, #tpu.memory_space<smem>>) -> (i32, i32, i32) {
    %c0_i32 = arith.constant 0 : i32
    %c0_i32_0 = arith.constant 0 : i32
    return %arg1, %arg0, %c0_i32 : i32, i32, i32
  }
}

</mosaic_0001>

<llo_original>
// kernel: tpu_custom_call.1
$region0: #{tpu_custom_call.1}
  #allocation0 [shape = 'u32[]', space=smem, size = 0x4, offset = 0x4, fixed_abs, tag = 'smem constant byte address 0x4 - core index']
  #allocation1 [shape = 'u32[144,128]{1,0:T(1,128)}', space=vmem, size = 0x12000, scoped, tag = 'internal scratch']
  #allocation2 [shape = 'f32[2,8,128]{2,1,0:T(8,128)}', space=vmem, size = 0x2000, scoped, tag = 'scratch operand']
  #allocation3 [shape = 's32[2]{0}', space=sflag, size = 0x8, scoped, tag = 'scratch operand']
  #allocation4 [shape = 's32[1]{0}', space=sflag, size = 0x4, scoped, tag = 'scoped memory for tpu_custom_call.1']
  #allocation5 [shape = 'u8[512]{0}', space=smem, size = 0x200, scoped, tag = 'prefetched SMEM operand 0']
  #allocation10 [shape = 's32[]', space=sflag, size = 0x4, offset = 0, fixed_abs, tag = 'sflag constant byte address 0x0 - dummy sync flag']
  #allocation11 [shape = 's32[]', space=sflag, size = 0x4, offset = 0, fixed_abs, tag = 'sflag constant byte address 0x0 - dummy sync flag']
  #allocation12 [shape = 'u32[]', space=smem, size = 0x4, offset = 0x44, fixed_abs, tag = 'smem constant byte address 0x44 - assertion arg 0']
  #allocation13 [shape = 'u32[]', space=smem, size = 0x4, offset = 0x48, fixed_abs, tag = 'smem constant byte address 0x48 - assertion arg 1']
  #allocation14 [shape = 's32[]', space=sflag, size = 0x4, offset = 0, fixed_abs, tag = 'sflag constant byte address 0x0 - dummy sync flag']
  #allocation15 [shape = 's32[]', space=sflag, size = 0x4, offset = 0, fixed_abs, tag = 'sflag constant byte address 0x0 - dummy sync flag']
  #allocation16 [shape = 's32[]', space=sflag, size = 0x4, offset = 0, fixed_abs, tag = 'sflag constant byte address 0x0 - dummy sync flag']
  #allocation17 [shape = 's32[]', space=sflag, size = 0x4, offset = 0, fixed_abs, tag = 'sflag constant byte address 0x0 - dummy sync flag']
  #allocation18 [shape = 's32[]', space=sflag, size = 0x4, offset = 0, fixed_abs, tag = 'sflag constant byte address 0x0 - dummy sync flag']
  #allocation19 [shape = 's32[]', space=sflag, size = 0x4, offset = 0, fixed_abs, tag = 'sflag constant byte address 0x0 - dummy sync flag']
  #allocation20 [shape = 's32[]', space=sflag, size = 0x4, offset = 0, fixed_abs, tag = 'sflag constant byte address 0x0 - dummy sync flag']
  #allocation21 [shape = 's32[]', space=sflag, size = 0x4, offset = 0, fixed_abs, tag = 'sflag constant byte address 0x0 - dummy sync flag']
  #allocation22 [shape = 's32[]', space=sflag, size = 0x4, offset = 0, fixed_abs, tag = 'sflag constant byte address 0x0 - dummy sync flag']
  #allocation23 [shape = 's32[]', space=sflag, size = 0x4, offset = 0, fixed_abs, tag = 'sflag constant byte address 0x0 - dummy sync flag']
  #allocation24 [shape = 's32[]', space=sflag, size = 0x4, offset = 0, fixed_abs, tag = 'sflag constant byte address 0x0 - dummy sync flag']
  #allocation25 [shape = 's32[]', space=sflag, size = 0x4, offset = 0, fixed_abs, tag = 'sflag constant byte address 0x0 - dummy sync flag']
  #allocation26 [shape = 's32[]', space=sflag, size = 0x4, offset = 0, fixed_abs, tag = 'sflag constant byte address 0x0 - dummy sync flag']
  #allocation27 [shape = 's32[]', space=sflag, size = 0x4, offset = 0, fixed_abs, tag = 'sflag constant byte address 0x0 - dummy sync flag']
  #allocation28 [shape = 's32[]', space=sflag, size = 0x4, offset = 0, fixed_abs, tag = 'sflag constant byte address 0x0 - dummy sync flag']
  #allocation29 [shape = 's32[]', space=sflag, size = 0x4, offset = 0, fixed_abs, tag = 'sflag constant byte address 0x0 - dummy sync flag']
  #allocation30 [shape = 's32[]', space=sflag, size = 0x4, offset = 0, fixed_abs, tag = 'sflag constant byte address 0x0 - dummy sync flag']
  #allocation31 [shape = 's32[]', space=sflag, size = 0x4, offset = 0, fixed_abs, tag = 'sflag constant byte address 0x0 - dummy sync flag']
  #allocation32 [shape = 's32[]', space=sflag, size = 0x4, offset = 0, fixed_abs, tag = 'sflag constant byte address 0x0 - dummy sync flag']
  #allocation33 [shape = 's32[]', space=sflag, size = 0x4, offset = 0, fixed_abs, tag = 'sflag constant byte address 0x0 - dummy sync flag']
  #allocation34 [shape = 's32[]', space=sflag, size = 0x4, offset = 0, fixed_abs, tag = 'sflag constant byte address 0x0 - dummy sync flag']
  #allocation35 [shape = 's32[]', space=sflag, size = 0x4, offset = 0, fixed_abs, tag = 'sflag constant byte address 0x0 - dummy sync flag']
  #allocation36 [shape = 's32[]', space=sflag, size = 0x4, offset = 0, fixed_abs, tag = 'sflag constant byte address 0x0 - dummy sync flag']
  #allocation37 [shape = 's32[]', space=sflag, size = 0x4, offset = 0, fixed_abs, tag = 'sflag constant byte address 0x0 - dummy sync flag']
  #allocation38 [shape = 's32[]', space=sflag, size = 0x4, offset = 0, fixed_abs, tag = 'sflag constant byte address 0x0 - dummy sync flag']
  #allocation39 [shape = 's32[]', space=sflag, size = 0x4, offset = 0, fixed_abs, tag = 'sflag constant byte address 0x0 - dummy sync flag']
  #allocation40 [shape = 's32[]', space=sflag, size = 0x4, offset = 0, fixed_abs, tag = 'sflag constant byte address 0x0 - dummy sync flag']
  #allocation41 [shape = 's32[]', space=sflag, size = 0x4, offset = 0, fixed_abs, tag = 'sflag constant byte address 0x0 - dummy sync flag']
  #allocation42 [shape = 's32[]', space=sflag, size = 0x4, offset = 0, fixed_abs, tag = 'sflag constant byte address 0x0 - dummy sync flag']
  #allocation43 [shape = 's32[]', space=sflag, size = 0x4, offset = 0, fixed_abs, tag = 'sflag constant byte address 0x0 - dummy sync flag']
  %s0 = inlined_call_operand.hbm [shape: s32[16], index: 0, kind: input, shape index: {}]
  %s1 = inlined_call_operand.hbm [shape: f32[64,128], index: 1, kind: input, shape index: {}]
  %s2 = inlined_call_operand.hbm [shape: f32[8,128], index: 2, kind: input, shape index: {}]
  %s3 = inlined_call_operand.hbm [shape: f32[2,8,128], index: 3, kind: output, shape index: {}]
  %s4 = sld [smem:[#allocation0]]
  $region113: #{tpu_custom_call.1} parent=0
    _
  %s6 = ssub.s32 1, %s4
  %s7 = scalar_select 0, %s6, %s4
  %9 = dma.hbm_to_smem %s0, 16, [#allocation5], [#allocation4]
  %10 = dma.done [#allocation4], 16
  %11 = sfence
  $region1: #{tpu_custom_call.1} parent=0
    #allocation6 [shape = 'u8[4096]{0}', space=vmem, size = 0x1000, scoped, tag = 'input window, operand 2, single buffered']
    #allocation7 [shape = 's32[2]{0}', space=sflag, size = 0x8, scoped, tag = 'scoped memory for tpu_custom_call.1']
    #allocation8 [shape = 's32[2]{0}', space=sflag, size = 0x8, scoped, tag = 'scoped memory for tpu_custom_call.1']
    #allocation9 [shape = 'u8[8192]{0}', space=vmem, size = 0x2000, scoped, tag = 'output window, operand 0']
    %12 = vsyncpa [#allocation7], 0
    %13 = vsyncpa [#allocation8], 0
    %s14 = scalar_lea.sflag [#allocation8], 1
    %15 = vsyncpa %s14, 0
    loop: start=0, step=1, limit=4
    $region2: #{tpu_custom_call.1} parent=1 // loop_pre_header
      _
    $region3: #{tpu_custom_call.1} parent=1 // loop_header
      %s17 = sphi 0, %s21
      %p18 = scmp.ge.s32.totalorder %s17, 4
      %s24 = sphi 0, %s36
      %s25 = sphi 0, %s32
      %s26 = sphi 0, %s24
      %s27 = sphi 0, %s25
      %s28 = sphi 0, %s26
      %s29 = sphi 0, %s27
      %s39 = sphi 0, %s41
      %s42 = sphi 0, %s39
      %s43 = sphi 0, %s42
      %s59 = sphi 0, %s43
      %s67 = sphi 0, %s69
      %s70 = sphi 0, %s67
      %s71 = sphi 0, %s70
      %s87 = sphi 0, %s71
    $region4: #{tpu_custom_call.1} parent=1 // loop_header_branch
      %20 = sbr.rel (%p18) target = $region8
    $region5: #{tpu_custom_call.1} parent=1 // loop_body
      %s22 = ssub.s32 %s17, 1
      %s23 = ssub.s32 %s17, 2
      %s30 = sadd.s32 1, %s25
      %p31 = scmp.ge.s32.totalorder %s30, 2
      %s32 = scalar_select %p31, 0, %s30
      %s33 = sadd.s32 1, %s24
      %s34 = scalar_select %p31, %s33, %s24
      %p35 = scmp.ge.s32.totalorder %s34, 1
      %s36 = scalar_select %p35, 0, %s34
      %s37 = ssub.s32 %s24, %s36
      %p38 = scmp.eq.s32.totalorder %s37, 0
      %s40 = sadd.s32 %s39, 1
      %s41 = scalar_select %p38, %s39, %s40
      %p44 = pneg %p38
      %p45 = scmp.eq.s32.totalorder %s17, 1
      %p46 = por %p44, %p45
      %p47 = scmp.ne.s32.totalorder %s39, %s42
      %p48 = scmp.eq.s32.totalorder %s17, 0
      %p49 = por %p47, %p48
      %p50 = scmp.ne.s32.totalorder %s39, %s42
      %p51 = scmp.eq.s32.totalorder %s22, 1
      %p52 = por %p50, %p51
      %p53 = scmp.ne.s32.totalorder %s42, %s43
      %p54 = scmp.eq.s32.totalorder %s22, 0
      %p55 = por %p53, %p54
      %p56 = scmp.ne.s32.totalorder %s42, %s43
      %p57 = scmp.eq.s32.totalorder %s23, 1
      %p58 = por %p56, %p57
      %p60 = scmp.ne.s32.totalorder %s43, %s59
      %p61 = scmp.eq.s32.totalorder %s23, 0
      %p62 = por %p60, %p61
      %s63 = ssub.s32 %s25, %s32
      %s64 = ssub.s32 %s24, %s36
      %s65 = sor.u32 %s63, %s64
      %p66 = scmp.eq.s32.totalorder %s65, 0
      %s68 = sadd.s32 %s67, 1
      %s69 = scalar_select %p66, %s67, %s68
      %p72 = pneg %p66
      %p73 = scmp.eq.s32.totalorder %s17, 1
      %p74 = por %p72, %p73
      %p75 = scmp.ne.s32.totalorder %s67, %s70
      %p76 = scmp.eq.s32.totalorder %s17, 0
      %p77 = por %p75, %p76
      %p78 = scmp.ne.s32.totalorder %s67, %s70
      %p79 = scmp.eq.s32.totalorder %s22, 1
      %p80 = por %p78, %p79
      %p81 = scmp.ne.s32.totalorder %s70, %s71
      %p82 = scmp.eq.s32.totalorder %s22, 0
      %p83 = por %p81, %p82
      %p84 = scmp.ne.s32.totalorder %s70, %s71
      %p85 = scmp.eq.s32.totalorder %s23, 1
      %p86 = por %p84, %p85
      %p88 = scmp.ne.s32.totalorder %s71, %s87
      %p89 = scmp.eq.s32.totalorder %s23, 0
      %p90 = por %p88, %p89
      %p91 = scmp.le.s32.totalorder 1, %s17
      %p92 = scmp.lt.s32.totalorder %s17, 3
      %p93 = pnand %p91, %p92
      %p94 = pneg %p93
      // Predicated region
      $region9: #{tpu_custom_call.1} parent=5 // pred_check
        _
      $region10: #{tpu_custom_call.1} parent=5 // pred_check_branch
        %96 = sbr.rel (%p93) target = $region12
      $region11: #{tpu_custom_call.1} parent=5 // pred_region
        %s97 = ssub.s32 %s17, 1
        // Predicated region
        $region13: #{tpu_custom_call.1} parent=11 // pred_check
          %p98 = pneg %p55
        $region14: #{tpu_custom_call.1} parent=11 // pred_check_branch
          %100 = sbr.rel (%p98) target = $region16
        $region15: #{tpu_custom_call.1} parent=11 // pred_region
          %s102 = ssub.s32 128, 128
          %103 = vsyncadd [#allocation7], %s102
          %s104 = smul.addr %s26, 128
          %s105 = scalar_lea.hbm %s2, %s104
          %s107 = sshll.u32 [#allocation6], 4
          %s108 = int_to_ptr.vmem [resolvable:$true] %s107
          %110 = dma.hbm_to_vmem [thread:$0]  %s105, 128, %s108, [#allocation7]
        $region16: #{tpu_custom_call.1} parent=11 // pred_fallthru
          _
      $region12: #{tpu_custom_call.1} parent=5 // pred_fallthru
        _
      %p111 = scmp.lt.s32.totalorder %s17, 2
      // Predicated region
      $region17: #{tpu_custom_call.1} parent=5 // pred_check
        %p112 = pneg %p111
      $region18: #{tpu_custom_call.1} parent=5 // pred_check_branch
        %114 = sbr.rel (%p112) target = $region20
      $region19: #{tpu_custom_call.1} parent=5 // pred_region
        _
      $region20: #{tpu_custom_call.1} parent=5 // pred_fallthru
        _
      %p115 = scmp.le.s32.totalorder 1, %s17
      %p116 = scmp.lt.s32.totalorder %s17, 3
      %p117 = pnand %p115, %p116
      %p118 = pneg %p117
      // Predicated region
      $region21: #{tpu_custom_call.1} parent=5 // pred_check
        _
      $region22: #{tpu_custom_call.1} parent=5 // pred_check_branch
        %120 = sbr.rel (%p117) target = $region24
      $region23: #{tpu_custom_call.1} parent=5 // pred_region
        %s121 = ssub.s32 %s17, 1
        // Predicated region
        $region25: #{tpu_custom_call.1} parent=23 // pred_check
          %p122 = pneg %p55
        $region26: #{tpu_custom_call.1} parent=23 // pred_check_branch
          %124 = sbr.rel (%p122) target = $region28
        $region27: #{tpu_custom_call.1} parent=23 // pred_region
          %125 = dma.done [#allocation7], 128
        $region28: #{tpu_custom_call.1} parent=23 // pred_fallthru
          _
        %p126 = pneg %p55
        %p127 = pneg %p52
        %p128 = pneg %p83
        %p129 = pneg %p80
        %s130 = sand.u32 %s70, 1
        %s131 = scalar_lea.sflag [#allocation8], %s130
        %s132 = sand.u32 %s70, 1
        %s133 = smul.addr %s132, 8
        %s134 = scalar_lea.vmem [#allocation9], %s133
        %p135 = scmp.lt.s32.totalorder %s27, 0
        %s136 = ssub.s32 0, %s27
        %s137 = scalar_select %p135, %s136, %s27
        %s138 = sand.u32 %s137, 1
        %s139 = ssub.s32 0, %s138
        %s140 = scalar_select %p135, %s139, %s138
        %p141 = scmp.ne.s32.totalorder %s140, 0
        %p142 = scmp.lt.s32.totalorder %s140, 0
        %p143 = pnand %p142, %p141
        %p144 = pneg %p143
        %s145 = sadd.s32 %s140, 2
        %s146 = scalar_select %p144, %s145, %s140
        %p147 = scmp.eq.s32.totalorder %s27, 0
        // Predicated region
        $region29: #{tpu_custom_call.1} parent=23 // pred_check
          %p148 = pneg %p147
        $region30: #{tpu_custom_call.1} parent=23 // pred_check_branch
          %150 = sbr.rel (%p148) target = $region32
        $region31: #{tpu_custom_call.1} parent=23 // pred_region
          %s151 = smul.u32 %s27, 8
          %s152 = smul.u32 %s26, 8
          %s153 = sadd.s32 %s151, %s152
          %s154 = sld [smem:[#allocation5 + %s153]]
          %s155 = smul.addr %s154, 16
          %s156 = scalar_lea.hbm %s1, %s155
          %s157 = smul.u32 %s146, 8
          %s158 = scalar_lea.vmem [#allocation2], %s157
          %s159 = scalar_lea.sflag [#allocation3], %s146
          // Predicated region
          $region33: #{tpu_custom_call.1} parent=31 // pred_check
            _
          $region34: #{tpu_custom_call.1} parent=31 // pred_check_branch
            %161 = sbr.rel target = $region36
          $region35: #{tpu_custom_call.1} parent=31 // pred_region
            %162 = sst [smem:[#allocation12]] [#allocation11]
            %163 = sst [smem:[#allocation13]] [#allocation10]
          $region36: #{tpu_custom_call.1} parent=31 // pred_fallthru
            _
          %165 = shalt.err (0)
          %s167 = sshll.u32 %s158, 4
          %s168 = int_to_ptr.vmem [resolvable:$true] %s167
          %170 = dma.hbm_to_vmem [thread:$0]  %s156, 16, %s168, %s159
          %s171 = sadd.s32 %s153, 1
          %s172 = sld [smem:[#allocation5 + %s171]]
          %s173 = smul.addr %s172, 16
          %s174 = scalar_lea.hbm %s1, %s173
          %s175 = sadd.s32 1, %s157
          %s176 = scalar_lea.vmem [#allocation2], %s175
          // Predicated region
          $region37: #{tpu_custom_call.1} parent=31 // pred_check
            _
          $region38: #{tpu_custom_call.1} parent=31 // pred_check_branch
            %178 = sbr.rel target = $region40
          $region39: #{tpu_custom_call.1} parent=31 // pred_region
            %179 = sst [smem:[#allocation12]] [#allocation15]
            %180 = sst [smem:[#allocation13]] [#allocation14]
          $region40: #{tpu_custom_call.1} parent=31 // pred_fallthru
            _
          %182 = shalt.err (0)
          %s184 = sshll.u32 %s176, 4
          %s185 = int_to_ptr.vmem [resolvable:$true] %s184
          %187 = dma.hbm_to_vmem [thread:$0]  %s174, 16, %s185, %s159
          %s188 = sadd.s32 %s153, 2
          %s189 = sld [smem:[#allocation5 + %s188]]
          %s190 = smul.addr %s189, 16
          %s191 = scalar_lea.hbm %s1, %s190
          %s192 = sadd.s32 2, %s157
          %s193 = scalar_lea.vmem [#allocation2], %s192
          // Predicated region
          $region41: #{tpu_custom_call.1} parent=31 // pred_check
            _
          $region42: #{tpu_custom_call.1} parent=31 // pred_check_branch
            %195 = sbr.rel target = $region44
          $region43: #{tpu_custom_call.1} parent=31 // pred_region
            %196 = sst [smem:[#allocation12]] [#allocation17]
            %197 = sst [smem:[#allocation13]] [#allocation16]
          $region44: #{tpu_custom_call.1} parent=31 // pred_fallthru
            _
          %199 = shalt.err (0)
          %s201 = sshll.u32 %s193, 4
          %s202 = int_to_ptr.vmem [resolvable:$true] %s201
          %204 = dma.hbm_to_vmem [thread:$0]  %s191, 16, %s202, %s159
          %s205 = sadd.s32 %s153, 3
          %s206 = sld [smem:[#allocation5 + %s205]]
          %s207 = smul.addr %s206, 16
          %s208 = scalar_lea.hbm %s1, %s207
          %s209 = sadd.s32 3, %s157
          %s210 = scalar_lea.vmem [#allocation2], %s209
          // Predicated region
          $region45: #{tpu_custom_call.1} parent=31 // pred_check
            _
          $region46: #{tpu_custom_call.1} parent=31 // pred_check_branch
            %212 = sbr.rel target = $region48
          $region47: #{tpu_custom_call.1} parent=31 // pred_region
            %213 = sst [smem:[#allocation12]] [#allocation19]
            %214 = sst [smem:[#allocation13]] [#allocation18]
          $region48: #{tpu_custom_call.1} parent=31 // pred_fallthru
            _
          %216 = shalt.err (0)
          %s218 = sshll.u32 %s210, 4
          %s219 = int_to_ptr.vmem [resolvable:$true] %s218
          %221 = dma.hbm_to_vmem [thread:$0]  %s208, 16, %s219, %s159
          %s222 = sadd.s32 %s153, 4
          %s223 = sld [smem:[#allocation5 + %s222]]
          %s224 = smul.addr %s223, 16
          %s225 = scalar_lea.hbm %s1, %s224
          %s226 = sadd.s32 4, %s157
          %s227 = scalar_lea.vmem [#allocation2], %s226
          // Predicated region
          $region49: #{tpu_custom_call.1} parent=31 // pred_check
            _
          $region50: #{tpu_custom_call.1} parent=31 // pred_check_branch
            %229 = sbr.rel target = $region52
          $region51: #{tpu_custom_call.1} parent=31 // pred_region
            %230 = sst [smem:[#allocation12]] [#allocation21]
            %231 = sst [smem:[#allocation13]] [#allocation20]
          $region52: #{tpu_custom_call.1} parent=31 // pred_fallthru
            _
          %233 = shalt.err (0)
          %s235 = sshll.u32 %s227, 4
          %s236 = int_to_ptr.vmem [resolvable:$true] %s235
          %238 = dma.hbm_to_vmem [thread:$0]  %s225, 16, %s236, %s159
          %s239 = sadd.s32 %s153, 5
          %s240 = sld [smem:[#allocation5 + %s239]]
          %s241 = smul.addr %s240, 16
          %s242 = scalar_lea.hbm %s1, %s241
          %s243 = sadd.s32 5, %s157
          %s244 = scalar_lea.vmem [#allocation2], %s243
          // Predicated region
          $region53: #{tpu_custom_call.1} parent=31 // pred_check
            _
          $region54: #{tpu_custom_call.1} parent=31 // pred_check_branch
            %246 = sbr.rel target = $region56
          $region55: #{tpu_custom_call.1} parent=31 // pred_region
            %247 = sst [smem:[#allocation12]] [#allocation23]
            %248 = sst [smem:[#allocation13]] [#allocation22]
          $region56: #{tpu_custom_call.1} parent=31 // pred_fallthru
            _
          %250 = shalt.err (0)
          %s252 = sshll.u32 %s244, 4
          %s253 = int_to_ptr.vmem [resolvable:$true] %s252
          %255 = dma.hbm_to_vmem [thread:$0]  %s242, 16, %s253, %s159
          %s256 = sadd.s32 %s153, 6
          %s257 = sld [smem:[#allocation5 + %s256]]
          %s258 = smul.addr %s257, 16
          %s259 = scalar_lea.hbm %s1, %s258
          %s260 = sadd.s32 6, %s157
          %s261 = scalar_lea.vmem [#allocation2], %s260
          // Predicated region
          $region57: #{tpu_custom_call.1} parent=31 // pred_check
            _
          $region58: #{tpu_custom_call.1} parent=31 // pred_check_branch
            %263 = sbr.rel target = $region60
          $region59: #{tpu_custom_call.1} parent=31 // pred_region
            %264 = sst [smem:[#allocation12]] [#allocation25]
            %265 = sst [smem:[#allocation13]] [#allocation24]
          $region60: #{tpu_custom_call.1} parent=31 // pred_fallthru
            _
          %267 = shalt.err (0)
          %s269 = sshll.u32 %s261, 4
          %s270 = int_to_ptr.vmem [resolvable:$true] %s269
          %272 = dma.hbm_to_vmem [thread:$0]  %s259, 16, %s270, %s159
          %s273 = sadd.s32 %s153, 7
          %s274 = sld [smem:[#allocation5 + %s273]]
          %s275 = smul.addr %s274, 16
          %s276 = scalar_lea.hbm %s1, %s275
          %s277 = sadd.s32 7, %s157
          %s278 = scalar_lea.vmem [#allocation2], %s277
          // Predicated region
          $region61: #{tpu_custom_call.1} parent=31 // pred_check
            _
          $region62: #{tpu_custom_call.1} parent=31 // pred_check_branch
            %280 = sbr.rel target = $region64
          $region63: #{tpu_custom_call.1} parent=31 // pred_region
            %281 = sst [smem:[#allocation12]] [#allocation27]
            %282 = sst [smem:[#allocation13]] [#allocation26]
          $region64: #{tpu_custom_call.1} parent=31 // pred_fallthru
            _
          %284 = shalt.err (0)
          %s286 = sshll.u32 %s278, 4
          %s287 = int_to_ptr.vmem [resolvable:$true] %s286
          %289 = dma.hbm_to_vmem [thread:$0]  %s276, 16, %s287, %s159
        $region32: #{tpu_custom_call.1} parent=23 // pred_fallthru
          _
        %s290 = sadd.s32 %s27, 1
        %p291 = scmp.lt.s32.totalorder %s290, 2
        // Predicated region
        $region65: #{tpu_custom_call.1} parent=23 // pred_check
          %p292 = pneg %p291
        $region66: #{tpu_custom_call.1} parent=23 // pred_check_branch
          %294 = sbr.rel (%p292) target = $region68
        $region67: #{tpu_custom_call.1} parent=23 // pred_region
          %s295 = ssub.s32 1, %s146
          %s296 = smul.u32 %s290, 8
          %s297 = smul.u32 %s26, 8
          %s298 = sadd.s32 %s296, %s297
          %s299 = sld [smem:[#allocation5 + %s298]]
          %s300 = smul.addr %s299, 16
          %s301 = scalar_lea.hbm %s1, %s300
          %s302 = smul.u32 %s295, 8
          %s303 = scalar_lea.vmem [#allocation2], %s302
          %s304 = scalar_lea.sflag [#allocation3], %s295
          // Predicated region
          $region69: #{tpu_custom_call.1} parent=67 // pred_check
            _
          $region70: #{tpu_custom_call.1} parent=67 // pred_check_branch
            %306 = sbr.rel target = $region72
          $region71: #{tpu_custom_call.1} parent=67 // pred_region
            %307 = sst [smem:[#allocation12]] [#allocation29]
            %308 = sst [smem:[#allocation13]] [#allocation28]
          $region72: #{tpu_custom_call.1} parent=67 // pred_fallthru
            _
          %310 = shalt.err (0)
          %s312 = sshll.u32 %s303, 4
          %s313 = int_to_ptr.vmem [resolvable:$true] %s312
          %315 = dma.hbm_to_vmem [thread:$0]  %s301, 16, %s313, %s304
          %s316 = sadd.s32 %s298, 1
          %s317 = sld [smem:[#allocation5 + %s316]]
          %s318 = smul.addr %s317, 16
          %s319 = scalar_lea.hbm %s1, %s318
          %s320 = sadd.s32 1, %s302
          %s321 = scalar_lea.vmem [#allocation2], %s320
          // Predicated region
          $region73: #{tpu_custom_call.1} parent=67 // pred_check
            _
          $region74: #{tpu_custom_call.1} parent=67 // pred_check_branch
            %323 = sbr.rel target = $region76
          $region75: #{tpu_custom_call.1} parent=67 // pred_region
            %324 = sst [smem:[#allocation12]] [#allocation31]
            %325 = sst [smem:[#allocation13]] [#allocation30]
          $region76: #{tpu_custom_call.1} parent=67 // pred_fallthru
            _
          %327 = shalt.err (0)
          %s329 = sshll.u32 %s321, 4
          %s330 = int_to_ptr.vmem [resolvable:$true] %s329
          %332 = dma.hbm_to_vmem [thread:$0]  %s319, 16, %s330, %s304
          %s333 = sadd.s32 %s298, 2
          %s334 = sld [smem:[#allocation5 + %s333]]
          %s335 = smul.addr %s334, 16
          %s336 = scalar_lea.hbm %s1, %s335
          %s337 = sadd.s32 2, %s302
          %s338 = scalar_lea.vmem [#allocation2], %s337
          // Predicated region
          $region77: #{tpu_custom_call.1} parent=67 // pred_check
            _
          $region78: #{tpu_custom_call.1} parent=67 // pred_check_branch
            %340 = sbr.rel target = $region80
          $region79: #{tpu_custom_call.1} parent=67 // pred_region
            %341 = sst [smem:[#allocation12]] [#allocation33]
            %342 = sst [smem:[#allocation13]] [#allocation32]
          $region80: #{tpu_custom_call.1} parent=67 // pred_fallthru
            _
          %344 = shalt.err (0)
          %s346 = sshll.u32 %s338, 4
          %s347 = int_to_ptr.vmem [resolvable:$true] %s346
          %349 = dma.hbm_to_vmem [thread:$0]  %s336, 16, %s347, %s304
          %s350 = sadd.s32 %s298, 3
          %s351 = sld [smem:[#allocation5 + %s350]]
          %s352 = smul.addr %s351, 16
          %s353 = scalar_lea.hbm %s1, %s352
          %s354 = sadd.s32 3, %s302
          %s355 = scalar_lea.vmem [#allocation2], %s354
          // Predicated region
          $region81: #{tpu_custom_call.1} parent=67 // pred_check
            _
          $region82: #{tpu_custom_call.1} parent=67 // pred_check_branch
            %357 = sbr.rel target = $region84
          $region83: #{tpu_custom_call.1} parent=67 // pred_region
            %358 = sst [smem:[#allocation12]] [#allocation35]
            %359 = sst [smem:[#allocation13]] [#allocation34]
          $region84: #{tpu_custom_call.1} parent=67 // pred_fallthru
            _
          %361 = shalt.err (0)
          %s363 = sshll.u32 %s355, 4
          %s364 = int_to_ptr.vmem [resolvable:$true] %s363
          %366 = dma.hbm_to_vmem [thread:$0]  %s353, 16, %s364, %s304
          %s367 = sadd.s32 %s298, 4
          %s368 = sld [smem:[#allocation5 + %s367]]
          %s369 = smul.addr %s368, 16
          %s370 = scalar_lea.hbm %s1, %s369
          %s371 = sadd.s32 4, %s302
          %s372 = scalar_lea.vmem [#allocation2], %s371
          // Predicated region
          $region85: #{tpu_custom_call.1} parent=67 // pred_check
            _
          $region86: #{tpu_custom_call.1} parent=67 // pred_check_branch
            %374 = sbr.rel target = $region88
          $region87: #{tpu_custom_call.1} parent=67 // pred_region
            %375 = sst [smem:[#allocation12]] [#allocation37]
            %376 = sst [smem:[#allocation13]] [#allocation36]
          $region88: #{tpu_custom_call.1} parent=67 // pred_fallthru
            _
          %378 = shalt.err (0)
          %s380 = sshll.u32 %s372, 4
          %s381 = int_to_ptr.vmem [resolvable:$true] %s380
          %383 = dma.hbm_to_vmem [thread:$0]  %s370, 16, %s381, %s304
          %s384 = sadd.s32 %s298, 5
          %s385 = sld [smem:[#allocation5 + %s384]]
          %s386 = smul.addr %s385, 16
          %s387 = scalar_lea.hbm %s1, %s386
          %s388 = sadd.s32 5, %s302
          %s389 = scalar_lea.vmem [#allocation2], %s388
          // Predicated region
          $region89: #{tpu_custom_call.1} parent=67 // pred_check
            _
          $region90: #{tpu_custom_call.1} parent=67 // pred_check_branch
            %391 = sbr.rel target = $region92
          $region91: #{tpu_custom_call.1} parent=67 // pred_region
            %392 = sst [smem:[#allocation12]] [#allocation39]
            %393 = sst [smem:[#allocation13]] [#allocation38]
          $region92: #{tpu_custom_call.1} parent=67 // pred_fallthru
            _
          %395 = shalt.err (0)
          %s397 = sshll.u32 %s389, 4
          %s398 = int_to_ptr.vmem [resolvable:$true] %s397
          %400 = dma.hbm_to_vmem [thread:$0]  %s387, 16, %s398, %s304
          %s401 = sadd.s32 %s298, 6
          %s402 = sld [smem:[#allocation5 + %s401]]
          %s403 = smul.addr %s402, 16
          %s404 = scalar_lea.hbm %s1, %s403
          %s405 = sadd.s32 6, %s302
          %s406 = scalar_lea.vmem [#allocation2], %s405
          // Predicated region
          $region93: #{tpu_custom_call.1} parent=67 // pred_check
            _
          $region94: #{tpu_custom_call.1} parent=67 // pred_check_branch
            %408 = sbr.rel target = $region96
          $region95: #{tpu_custom_call.1} parent=67 // pred_region
            %409 = sst [smem:[#allocation12]] [#allocation41]
            %410 = sst [smem:[#allocation13]] [#allocation40]
          $region96: #{tpu_custom_call.1} parent=67 // pred_fallthru
            _
          %412 = shalt.err (0)
          %s414 = sshll.u32 %s406, 4
          %s415 = int_to_ptr.vmem [resolvable:$true] %s414
          %417 = dma.hbm_to_vmem [thread:$0]  %s404, 16, %s415, %s304
          %s418 = sadd.s32 %s298, 7
          %s419 = sld [smem:[#allocation5 + %s418]]
          %s420 = smul.addr %s419, 16
          %s421 = scalar_lea.hbm %s1, %s420
          %s422 = sadd.s32 7, %s302
          %s423 = scalar_lea.vmem [#allocation2], %s422
          // Predicated region
          $region97: #{tpu_custom_call.1} parent=67 // pred_check
            _
          $region98: #{tpu_custom_call.1} parent=67 // pred_check_branch
            %425 = sbr.rel target = $region100
          $region99: #{tpu_custom_call.1} parent=67 // pred_region
            %426 = sst [smem:[#allocation12]] [#allocation43]
            %427 = sst [smem:[#allocation13]] [#allocation42]
          $region100: #{tpu_custom_call.1} parent=67 // pred_fallthru
            _
          %429 = shalt.err (0)
          %s431 = sshll.u32 %s423, 4
          %s432 = int_to_ptr.vmem [resolvable:$true] %s431
          %434 = dma.hbm_to_vmem [thread:$0]  %s421, 16, %s432, %s304
        $region68: #{tpu_custom_call.1} parent=23 // pred_fallthru
          _
        %s435 = scalar_lea.sflag [#allocation3], %s146
        %437 = dma.done %s435, 16
        %439 = dma.done %s435, 16
        %441 = dma.done %s435, 16
        %443 = dma.done %s435, 16
        %445 = dma.done %s435, 16
        %447 = dma.done %s435, 16
        %449 = dma.done %s435, 16
        %451 = dma.done %s435, 16
        %s452 = smul.u32 %s146, 8
        %s453 = scalar_lea.vmem [#allocation2], %s452
        %v454 = vld [vmem:[%s453] sm:$0xff]
        %v455 = vld [vmem:[#allocation6] sm:$0xff]
        %v456 = vadd.f32 %v454, %v455
        %457 = vst [vmem:[%s134] sm:$0xff] %v456
        %s458 = sand.u32 %s70, 1
        %s459 = scalar_lea.sflag [#allocation8], %s458
        %s460 = sand.u32 %s70, 1
        %s461 = smul.addr %s460, 8
        %s462 = scalar_lea.vmem [#allocation9], %s461
        // Predicated region
        $region101: #{tpu_custom_call.1} parent=23 // pred_check
          %p463 = pneg %p80
        $region102: #{tpu_custom_call.1} parent=23 // pred_check_branch
          %465 = sbr.rel (%p463) target = $region104
        $region103: #{tpu_custom_call.1} parent=23 // pred_region
          %s467 = ssub.s32 128, 128
          %468 = vsyncadd %s459, %s467
          %s469 = sadd.s32 %s26, %s27
          %s470 = smul.addr %s469, 128
          %s471 = scalar_lea.hbm %s3, %s470
          %s473 = sshll.u32 %s462, 4
          %s474 = int_to_ptr.vmem [resolvable:$true] %s473
          %476 = dma.vmem_to_hbm [thread:$0]  %s474, 128, %s471, %s459
        $region104: #{tpu_custom_call.1} parent=23 // pred_fallthru
          _
      $region24: #{tpu_custom_call.1} parent=5 // pred_fallthru
        _
      %p477 = scmp.le.s32.totalorder 2, %s17
      // Predicated region
      $region105: #{tpu_custom_call.1} parent=5 // pred_check
        %p478 = pneg %p477
      $region106: #{tpu_custom_call.1} parent=5 // pred_check_branch
        %480 = sbr.rel (%p478) target = $region108
      $region107: #{tpu_custom_call.1} parent=5 // pred_region
        %s481 = ssub.s32 %s17, 2
        // Predicated region
        $region109: #{tpu_custom_call.1} parent=107 // pred_check
          %p482 = pneg %p86
        $region110: #{tpu_custom_call.1} parent=107 // pred_check_branch
          %484 = sbr.rel (%p482) target = $region112
        $region111: #{tpu_custom_call.1} parent=107 // pred_region
          %s485 = sand.u32 %s71, 1
          %s486 = scalar_lea.sflag [#allocation8], %s485
          %s487 = sand.u32 %s71, 1
          %s488 = smul.addr %s487, 8
          %s489 = scalar_lea.vmem [#allocation9], %s488
          %490 = dma.done %s486, 128
        $region112: #{tpu_custom_call.1} parent=107 // pred_fallthru
          _
      $region108: #{tpu_custom_call.1} parent=5 // pred_fallthru
        _
    $region6: #{tpu_custom_call.1} parent=1 // loop_footer
      %s21 = sadd.s32 1, %s17
    $region7: #{tpu_custom_call.1} parent=1 // loop_footer_branch
      %16 = sbr.rel target = $region3
    $region8: #{tpu_custom_call.1} parent=1 // loop_exit
      _
    %491 = vsyncpa [#allocation7], 1
    %s492 = scalar_lea.sflag [#allocation7], 1
    %493 = vsyncpa %s492, 1
    %494 = vsyncpa [#allocation8], 1
    %s495 = scalar_lea.sflag [#allocation8], 1
    %496 = vsyncpa %s495, 1
  %497 = vsyncmov [#allocation3]
  %s498 = vpop.sfrf %497
  %p499 = scmp.eq.s32.totalorder %s498, 0
  %p500 = pneg %p499
  %502 = shalt.err (%p500)
  %s503 = scalar_lea.sflag [#allocation3], 1
  %504 = vsyncmov %s503
  %s505 = vpop.sfrf %504
  %p506 = scmp.eq.s32.totalorder %s505, 0
  %p507 = pneg %p506
  %509 = shalt.err (%p507)

</llo_original>
